<compile_context>
chip_gen: v6e
topology: v6e:2x2x1
jax: 0.10.0
libtpu: 0.0.40
codegen_flags: <defaults>
</compile_context>

<pallas_src>
import functools

import jax
import jax.numpy as jnp
from jax.experimental import pallas as pl
from jax.experimental.pallas import tpu as pltpu

LANE = 128
D_IN = 28 * 28        # 784
D_IN_PAD = 896        # 7 * 128 — lane-aligned contraction dim for layer 1
H1 = 256
H2 = 64
H2_PAD = 128          # lane-aligned hidden width for layer 2
D_OUT = 10
D_OUT_PAD = 128       # lane-dense output (unmasked stores); slice to 10 outside


def _round_up(n, m):
    return (n + m - 1) // m * m


def mlp_kernel(x_ref, w1_ref, b1_ref, w2_ref, b2_ref, w3_ref, b3_ref, o_ref):
    # layer 1: [bt,896]bf16 @ [896,256]bf16 -> f32 acc, bias+ReLU in f32
    h1 = jnp.dot(x_ref[...], w1_ref[...], preferred_element_type=jnp.float32)
    h1 = jnp.maximum(h1 + b1_ref[...], 0.0)
    # layer 2: [bt,256] @ [256,128] (cols 64..127 are zero padding)
    h2 = jnp.dot(h1.astype(jnp.bfloat16), w2_ref[...],
                 preferred_element_type=jnp.float32)
    h2 = jnp.maximum(h2 + b2_ref[...], 0.0)
    # layer 3: [bt,128] @ [128,128] -> padded logits (cols 10..127 are garbage-free zeros+bias-pad)
    o_ref[...] = (
        jnp.dot(h2.astype(jnp.bfloat16), w3_ref[...],
                preferred_element_type=jnp.float32)
        + b3_ref[...]
    )


def _pad2(a, rows, cols):
    r, c = a.shape
    return jnp.pad(a, ((0, rows - r), (0, cols - c)))


def prepare_params(params):
    """Pad to lane-aligned shapes; weights -> bf16, biases stay f32."""
    w1 = _pad2(params["w1"], D_IN_PAD, H1).astype(jnp.bfloat16)
    w2 = _pad2(params["w2"], H1, H2_PAD).astype(jnp.bfloat16)
    w3 = _pad2(params["w3"], H2_PAD, D_OUT_PAD).astype(jnp.bfloat16)
    b1 = params["b1"].astype(jnp.float32)                       # [1, 256]
    b2 = _pad2(params["b2"], 1, H2_PAD).astype(jnp.float32)     # [1, 128]
    b3 = _pad2(params["b3"], 1, D_OUT_PAD).astype(jnp.float32)  # [1, 128]
    return w1, b1, w2, b2, w3, b3


@functools.partial(jax.jit, static_argnames=("batch_tile",))
def net_forward(x, params, *, batch_tile=512):
    """x: [B, 784] float32. params: w{1,2,3} as [in,out], b{1,2,3} as [1,out]."""
    B = x.shape[0]
    w1, b1, w2, b2, w3, b3 = prepare_params(params)

    # batch tile: multiple of 8 sublanes, capped at batch_tile (512 default is
    # safe for v7x's 64 MiB VMEM with double-buffered x tiles + resident weights).
    bt = _round_up(min(batch_tile, _round_up(B, 8)), 8)
    B_pad = _round_up(B, bt)

    xp = jnp.pad(x, ((0, B_pad - B), (0, D_IN_PAD - D_IN))).astype(jnp.bfloat16)

    const = lambda i: (0, 0)   # weights/biases: same block every step -> VMEM-resident

    out = pl.pallas_call(
        mlp_kernel,
        out_shape=jax.ShapeDtypeStruct((B_pad, D_OUT_PAD), jnp.float32),
        grid=(B_pad // bt,),
        in_specs=[
            pl.BlockSpec((bt, D_IN_PAD), lambda i: (i, 0)),   # x batch tile
            pl.BlockSpec((D_IN_PAD, H1), const),              # w1
            pl.BlockSpec((1, H1), const),                     # b1
            pl.BlockSpec((H1, H2_PAD), const),                # w2
            pl.BlockSpec((1, H2_PAD), const),                 # b2
            pl.BlockSpec((H2_PAD, D_OUT_PAD), const),         # w3
            pl.BlockSpec((1, D_OUT_PAD), const),              # b3
        ],
        out_specs=pl.BlockSpec((bt, D_OUT_PAD), lambda i: (i, 0)),
        compiler_params=pltpu.CompilerParams(
            dimension_semantics=("parallel",),                # shard batch over v7x's 2 TCs
            vmem_limit_bytes=32 * 1024 * 1024,
        ),
    )(xp, w1, b1, w2, b2, w3, b3)

    return out[:B, :D_OUT]


def init_params(key):
    """PyTorch-default Linear init (U[-1/sqrt(fan_in), 1/sqrt(fan_in)]);
    weights stored pre-transposed as [in, out]."""
    dims = [(D_IN, H1), (H1, H2), (H2, D_OUT)]
    params = {}
    keys = jax.random.split(key, 2 * len(dims))
    for i, (fan_in, fan_out) in enumerate(dims):
        bound = 1.0 / jnp.sqrt(float(fan_in))
        params[f"w{i + 1}"] = jax.random.uniform(
            keys[2 * i], (fan_in, fan_out), jnp.float32, -bound, bound)
        params[f"b{i + 1}"] = jax.random.uniform(
            keys[2 * i + 1], (1, fan_out), jnp.float32, -bound, bound)
    return params


def reference_forward(x, params):
    h1 = jnp.maximum(x @ params["w1"] + params["b1"], 0.0)
    h2 = jnp.maximum(h1 @ params["w2"] + params["b2"], 0.0)
    return h2 @ params["w3"] + params["b3"]


if __name__ == "__main__":
    key = jax.random.PRNGKey(0)
    pkey, xkey = jax.random.split(key)
    params = init_params(pkey)

    B = 12  # small batch; exercises batch padding (12 -> tile of 16)
    x = jax.random.normal(xkey, (B, D_IN), jnp.float32)

    out = net_forward(x, params)
    out = jax.block_until_ready(out)

    ref = reference_forward(x, params)
    assert out.shape == (B, D_OUT), out.shape
    # bf16 operands vs f32 reference -> loosened tolerance
    assert jnp.allclose(out, ref, atol=5e-2, rtol=5e-2), "mismatch vs reference"

    print("KERNEL_OK")
</pallas_src>

<mosaic_0001>
module attributes {stable_mosaic.version = 11 : i64} {
  func.func @mlp_kernel(%arg0: i32, %arg1: memref<16x896xbf16, #tpu.memory_space<vmem>>, %arg2: memref<896x256xbf16, #tpu.memory_space<vmem>>, %arg3: memref<1x256xf32, #tpu.memory_space<vmem>>, %arg4: memref<256x128xbf16, #tpu.memory_space<vmem>>, %arg5: memref<1x128xf32, #tpu.memory_space<vmem>>, %arg6: memref<128x128xbf16, #tpu.memory_space<vmem>>, %arg7: memref<1x128xf32, #tpu.memory_space<vmem>>, %arg8: memref<16x128xf32, #tpu.memory_space<vmem>>) attributes {dimension_semantics = [#tpu.dimension_semantics<parallel>], iteration_bounds = array<i64: 1>, scalar_prefetch = 0 : i64, scratch_operands = 0 : i64, tpu.core_type = #tpu.core_type<tc>, window_params = [{transform_indices = @transform_0, window_bounds = array<i64: 16, 896>}, {pipeline_mode = #tpu.pipeline_mode<synchronous>, transform_indices = @transform_1, window_bounds = array<i64: 896, 256>}, {pipeline_mode = #tpu.pipeline_mode<synchronous>, transform_indices = @transform_2, window_bounds = array<i64: 1, 256>}, {pipeline_mode = #tpu.pipeline_mode<synchronous>, transform_indices = @transform_3, window_bounds = array<i64: 256, 128>}, {pipeline_mode = #tpu.pipeline_mode<synchronous>, transform_indices = @transform_4, window_bounds = array<i64: 1, 128>}, {pipeline_mode = #tpu.pipeline_mode<synchronous>, transform_indices = @transform_5, window_bounds = array<i64: 128, 128>}, {pipeline_mode = #tpu.pipeline_mode<synchronous>, transform_indices = @transform_6, window_bounds = array<i64: 1, 128>}, {transform_indices = @transform_7, window_bounds = array<i64: 16, 128>}]} {
    %c0 = arith.constant 0 : index
    %c0_0 = arith.constant 0 : index
    %0 = vector.load %arg1[%c0, %c0_0] : memref<16x896xbf16, #tpu.memory_space<vmem>>, vector<16x896xbf16>
    %c0_1 = arith.constant 0 : index
    %c0_2 = arith.constant 0 : index
    %1 = vector.load %arg2[%c0_1, %c0_2] : memref<896x256xbf16, #tpu.memory_space<vmem>>, vector<896x256xbf16>
    %cst = arith.constant dense<0.000000e+00> : vector<16x256xf32>
    %2 = tpu.matmul %0, %1, %cst {dimension_numbers = #tpu.dot_dimension_numbers<[1], [0], [0], [1], [0, 0, 1, 1], [], []>} : vector<16x896xbf16>, vector<896x256xbf16>, vector<16x256xf32> -> vector<16x256xf32>
    %c0_3 = arith.constant 0 : index
    %c0_4 = arith.constant 0 : index
    %3 = vector.load %arg3[%c0_3, %c0_4] : memref<1x256xf32, #tpu.memory_space<vmem>>, vector<1x256xf32>
    %4 = vector.broadcast %3 : vector<1x256xf32> to vector<16x256xf32>
    %5 = arith.addf %2, %4 : vector<16x256xf32>
    %cst_5 = arith.constant 0.000000e+00 : f32
    %6 = vector.broadcast %cst_5 : f32 to vector<16x256xf32>
    %7 = arith.maximumf %5, %6 : vector<16x256xf32>
    %8 = arith.truncf %7 : vector<16x256xf32> to vector<16x256xbf16>
    %c0_6 = arith.constant 0 : index
    %c0_7 = arith.constant 0 : index
    %9 = vector.load %arg4[%c0_6, %c0_7] : memref<256x128xbf16, #tpu.memory_space<vmem>>, vector<256x128xbf16>
    %cst_8 = arith.constant dense<0.000000e+00> : vector<16x128xf32>
    %10 = tpu.matmul %8, %9, %cst_8 {dimension_numbers = #tpu.dot_dimension_numbers<[1], [0], [0], [1], [0, 0, 1, 1], [], []>} : vector<16x256xbf16>, vector<256x128xbf16>, vector<16x128xf32> -> vector<16x128xf32>
    %c0_9 = arith.constant 0 : index
    %c0_10 = arith.constant 0 : index
    %11 = vector.load %arg5[%c0_9, %c0_10] : memref<1x128xf32, #tpu.memory_space<vmem>>, vector<1x128xf32>
    %12 = vector.broadcast %11 : vector<1x128xf32> to vector<16x128xf32>
    %13 = arith.addf %10, %12 : vector<16x128xf32>
    %cst_11 = arith.constant 0.000000e+00 : f32
    %14 = vector.broadcast %cst_11 : f32 to vector<16x128xf32>
    %15 = arith.maximumf %13, %14 : vector<16x128xf32>
    %16 = arith.truncf %15 : vector<16x128xf32> to vector<16x128xbf16>
    %c0_12 = arith.constant 0 : index
    %c0_13 = arith.constant 0 : index
    %17 = vector.load %arg6[%c0_12, %c0_13] : memref<128x128xbf16, #tpu.memory_space<vmem>>, vector<128x128xbf16>
    %cst_14 = arith.constant dense<0.000000e+00> : vector<16x128xf32>
    %18 = tpu.matmul %16, %17, %cst_14 {dimension_numbers = #tpu.dot_dimension_numbers<[1], [0], [0], [1], [0, 0, 1, 1], [], []>} : vector<16x128xbf16>, vector<128x128xbf16>, vector<16x128xf32> -> vector<16x128xf32>
    %c0_15 = arith.constant 0 : index
    %c0_16 = arith.constant 0 : index
    %19 = vector.load %arg7[%c0_15, %c0_16] : memref<1x128xf32, #tpu.memory_space<vmem>>, vector<1x128xf32>
    %20 = vector.broadcast %19 : vector<1x128xf32> to vector<16x128xf32>
    %21 = arith.addf %18, %20 : vector<16x128xf32>
    %c0_17 = arith.constant 0 : index
    %c0_18 = arith.constant 0 : index
    %22 = vector.load %arg8[%c0_17, %c0_18] : memref<16x128xf32, #tpu.memory_space<vmem>>, vector<16x128xf32>
    tpu.vector_store %arg8[%c0_17, %c0_18], %21 {strides = array<i32>} : memref<16x128xf32, #tpu.memory_space<vmem>>, vector<16x128xf32>,
    return
  }
  func.func @transform_0(%arg0: i32) -> (i32, i32) {
    %c0_i32 = arith.constant 0 : i32
    %c0_i32_0 = arith.constant 0 : i32
    return %arg0, %c0_i32 : i32, i32
  }
  func.func @transform_1(%arg0: i32) -> (i32, i32) {
    %c0_i32 = arith.constant 0 : i32
    %c0_i32_0 = arith.constant 0 : i32
    %c0_i32_1 = arith.constant 0 : i32
    return %c0_i32, %c0_i32_0 : i32, i32
  }
  func.func @transform_2(%arg0: i32) -> (i32, i32) {
    %c0_i32 = arith.constant 0 : i32
    %c0_i32_0 = arith.constant 0 : i32
    %c0_i32_1 = arith.constant 0 : i32
    return %c0_i32, %c0_i32_0 : i32, i32
  }
  func.func @transform_3(%arg0: i32) -> (i32, i32) {
    %c0_i32 = arith.constant 0 : i32
    %c0_i32_0 = arith.constant 0 : i32
    %c0_i32_1 = arith.constant 0 : i32
    return %c0_i32, %c0_i32_0 : i32, i32
  }
  func.func @transform_4(%arg0: i32) -> (i32, i32) {
    %c0_i32 = arith.constant 0 : i32
    %c0_i32_0 = arith.constant 0 : i32
    %c0_i32_1 = arith.constant 0 : i32
    return %c0_i32, %c0_i32_0 : i32, i32
  }
  func.func @transform_5(%arg0: i32) -> (i32, i32) {
    %c0_i32 = arith.constant 0 : i32
    %c0_i32_0 = arith.constant 0 : i32
    %c0_i32_1 = arith.constant 0 : i32
    return %c0_i32, %c0_i32_0 : i32, i32
  }
  func.func @transform_6(%arg0: i32) -> (i32, i32) {
    %c0_i32 = arith.constant 0 : i32
    %c0_i32_0 = arith.constant 0 : i32
    %c0_i32_1 = arith.constant 0 : i32
    return %c0_i32, %c0_i32_0 : i32, i32
  }
  func.func @transform_7(%arg0: i32) -> (i32, i32) {
    %c0_i32 = arith.constant 0 : i32
    %c0_i32_0 = arith.constant 0 : i32
    return %arg0, %c0_i32 : i32, i32
  }
}

</mosaic_0001>

<llo_original>
// kernel: net_forward.1
$region0: #{net_forward.1}
  #allocation0 [shape = 'u32[]', space=smem, size = 0x4, offset = 0x4, fixed_abs, tag = 'smem constant byte address 0x4 - core index']
  #allocation1 [shape = 'u32[144,128]{1,0:T(1,128)}', space=vmem, size = 0x12000, scoped, tag = 'internal scratch']
  %s0 = inlined_call_operand.vmem [shape: bf16[16,896], index: 0, kind: input, shape index: {}]
  %s1 = inlined_call_operand.vmem [shape: bf16[896,256], index: 1, kind: input, shape index: {}]
  %s2 = inlined_call_operand.vmem [shape: f32[1,256], index: 2, kind: input, shape index: {}]
  %s3 = inlined_call_operand.vmem [shape: bf16[256,128], index: 3, kind: input, shape index: {}]
  %s4 = inlined_call_operand.vmem [shape: f32[1,128], index: 4, kind: input, shape index: {}]
  %s5 = inlined_call_operand.vmem [shape: bf16[128,128], index: 5, kind: input, shape index: {}]
  %s6 = inlined_call_operand.vmem [shape: f32[1,128], index: 6, kind: input, shape index: {}]
  %s7 = inlined_call_operand.hbm [shape: f32[16,128], index: 7, kind: output, shape index: {}]
  %s8 = sld [smem:[#allocation0]]
  $region38: #{net_forward.1} parent=0
    _
  %s10 = ssub.s32 1, %s8
  %s11 = scalar_select 0, %s10, %s8
  $region1: #{net_forward.1} parent=0
    #allocation2 [shape = 'u8[8192]{0}', space=vmem, size = 0x2000, scoped, tag = 'output window, operand 0, single buffered']
    #allocation3 [shape = 's32[1]{0}', space=sflag, size = 0x4, scoped, tag = 'scoped memory for net_forward.1']
    %12 = vsyncpa [#allocation3], 0
    // Predicated region
    $region2: #{net_forward.1} parent=1 // pred_check
      _
    $region3: #{net_forward.1} parent=1 // pred_check_branch
      %14 = sbr.rel (0) target = $region5
    $region4: #{net_forward.1} parent=1 // pred_region
      _
    $region5: #{net_forward.1} parent=1 // pred_fallthru
      _
    // Predicated region
    $region6: #{net_forward.1} parent=1 // pred_check
      _
    $region7: #{net_forward.1} parent=1 // pred_check_branch
      %16 = sbr.rel (0) target = $region9
    $region8: #{net_forward.1} parent=1 // pred_region
      _
    $region9: #{net_forward.1} parent=1 // pred_fallthru
      _
    // Predicated region
    $region10: #{net_forward.1} parent=1 // pred_check
      _
    $region11: #{net_forward.1} parent=1 // pred_check_branch
      %18 = sbr.rel (0) target = $region13
    $region12: #{net_forward.1} parent=1 // pred_region
      _
    $region13: #{net_forward.1} parent=1 // pred_fallthru
      _
    // Predicated region
    $region14: #{net_forward.1} parent=1 // pred_check
      _
    $region15: #{net_forward.1} parent=1 // pred_check_branch
      %20 = sbr.rel (0) target = $region17
    $region16: #{net_forward.1} parent=1 // pred_region
      _
    $region17: #{net_forward.1} parent=1 // pred_fallthru
      _
    // Predicated region
    $region18: #{net_forward.1} parent=1 // pred_check
      _
    $region19: #{net_forward.1} parent=1 // pred_check_branch
      %22 = sbr.rel (0) target = $region21
    $region20: #{net_forward.1} parent=1 // pred_region
      _
    $region21: #{net_forward.1} parent=1 // pred_fallthru
      _
    // Predicated region
    $region22: #{net_forward.1} parent=1 // pred_check
      _
    $region23: #{net_forward.1} parent=1 // pred_check_branch
      %24 = sbr.rel (0) target = $region25
    $region24: #{net_forward.1} parent=1 // pred_region
      _
    $region25: #{net_forward.1} parent=1 // pred_fallthru
      _
    // Predicated region
    $region26: #{net_forward.1} parent=1 // pred_check
      _
    $region27: #{net_forward.1} parent=1 // pred_check_branch
      %26 = sbr.rel (0) target = $region29
    $region28: #{net_forward.1} parent=1 // pred_region
      _
    $region29: #{net_forward.1} parent=1 // pred_fallthru
      _
    %v28 = vld [vmem:[%s0] sm:$0xff]
    %v29 = vld [vmem:[%s0 + $0x8] sm:$0xff]
    %v30 = vld [vmem:[%s0 + $0x10] sm:$0xff]
    %v31 = vld [vmem:[%s0 + $0x18] sm:$0xf]
    %v32 = vld [vmem:[%s0 + $0x1c] sm:$0xff]
    %v33 = vld [vmem:[%s0 + $0x24] sm:$0xff]
    %v34 = vld [vmem:[%s0 + $0x2c] sm:$0xff]
    %v35 = vld [vmem:[%s0 + $0x34] sm:$0xf]
    %v36 = vld [vmem:[%s1] sm:$0xff]
    %v37 = vld [vmem:[%s1 + $0x8] sm:$0xff]
    %v38 = vld [vmem:[%s1 + $0x10] sm:$0xff]
    %v39 = vld [vmem:[%s1 + $0x18] sm:$0xff]
    %v40 = vld [vmem:[%s1 + $0x20] sm:$0xff]
    %v41 = vld [vmem:[%s1 + $0x28] sm:$0xff]
    %v42 = vld [vmem:[%s1 + $0x30] sm:$0xff]
    %v43 = vld [vmem:[%s1 + $0x38] sm:$0xff]
    %v44 = vld [vmem:[%s1 + $0x40] sm:$0xff]
    %v45 = vld [vmem:[%s1 + $0x48] sm:$0xff]
    %v46 = vld [vmem:[%s1 + $0x50] sm:$0xff]
    %v47 = vld [vmem:[%s1 + $0x58] sm:$0xff]
    %v48 = vld [vmem:[%s1 + $0x60] sm:$0xff]
    %v49 = vld [vmem:[%s1 + $0x68] sm:$0xff]
    %v50 = vld [vmem:[%s1 + $0x70] sm:$0xff]
    %v51 = vld [vmem:[%s1 + $0x78] sm:$0xff]
    %v52 = vld [vmem:[%s1 + $0x80] sm:$0xff]
    %v53 = vld [vmem:[%s1 + $0x88] sm:$0xff]
    %v54 = vld [vmem:[%s1 + $0x90] sm:$0xff]
    %v55 = vld [vmem:[%s1 + $0x98] sm:$0xff]
    %v56 = vld [vmem:[%s1 + $0xa0] sm:$0xff]
    %v57 = vld [vmem:[%s1 + $0xa8] sm:$0xff]
    %v58 = vld [vmem:[%s1 + $0xb0] sm:$0xff]
    %v59 = vld [vmem:[%s1 + $0xb8] sm:$0xff]
    %v60 = vld [vmem:[%s1 + $0xc0] sm:$0xff]
    %v61 = vld [vmem:[%s1 + $0xc8] sm:$0xff]
    %v62 = vld [vmem:[%s1 + $0xd0] sm:$0xff]
    %v63 = vld [vmem:[%s1 + $0xd8] sm:$0xff]
    %v64 = vld [vmem:[%s1 + $0xe0] sm:$0xff]
    %v65 = vld [vmem:[%s1 + $0xe8] sm:$0xff]
    %v66 = vld [vmem:[%s1 + $0xf0] sm:$0xff]
    %v67 = vld [vmem:[%s1 + $0xf8] sm:$0xff]
    %v68 = vld [vmem:[%s1 + $0x100] sm:$0xff]
    %v69 = vld [vmem:[%s1 + $0x108] sm:$0xff]
    %v70 = vld [vmem:[%s1 + $0x110] sm:$0xff]
    %v71 = vld [vmem:[%s1 + $0x118] sm:$0xff]
    %v72 = vld [vmem:[%s1 + $0x120] sm:$0xff]
    %v73 = vld [vmem:[%s1 + $0x128] sm:$0xff]
    %v74 = vld [vmem:[%s1 + $0x130] sm:$0xff]
    %v75 = vld [vmem:[%s1 + $0x138] sm:$0xff]
    %v76 = vld [vmem:[%s1 + $0x140] sm:$0xff]
    %v77 = vld [vmem:[%s1 + $0x148] sm:$0xff]
    %v78 = vld [vmem:[%s1 + $0x150] sm:$0xff]
    %v79 = vld [vmem:[%s1 + $0x158] sm:$0xff]
    %v80 = vld [vmem:[%s1 + $0x160] sm:$0xff]
    %v81 = vld [vmem:[%s1 + $0x168] sm:$0xff]
    %v82 = vld [vmem:[%s1 + $0x170] sm:$0xff]
    %v83 = vld [vmem:[%s1 + $0x178] sm:$0xff]
    %v84 = vld [vmem:[%s1 + $0x180] sm:$0xff]
    %v85 = vld [vmem:[%s1 + $0x188] sm:$0xff]
    %v86 = vld [vmem:[%s1 + $0x190] sm:$0xff]
    %v87 = vld [vmem:[%s1 + $0x198] sm:$0xff]
    %v88 = vld [vmem:[%s1 + $0x1a0] sm:$0xff]
    %v89 = vld [vmem:[%s1 + $0x1a8] sm:$0xff]
    %v90 = vld [vmem:[%s1 + $0x1b0] sm:$0xff]
    %v91 = vld [vmem:[%s1 + $0x1b8] sm:$0xff]
    %v92 = vld [vmem:[%s1 + $0x1c0] sm:$0xff]
    %v93 = vld [vmem:[%s1 + $0x1c8] sm:$0xff]
    %v94 = vld [vmem:[%s1 + $0x1d0] sm:$0xff]
    %v95 = vld [vmem:[%s1 + $0x1d8] sm:$0xff]
    %v96 = vld [vmem:[%s1 + $0x1e0] sm:$0xff]
    %v97 = vld [vmem:[%s1 + $0x1e8] sm:$0xff]
    %v98 = vld [vmem:[%s1 + $0x1f0] sm:$0xff]
    %v99 = vld [vmem:[%s1 + $0x1f8] sm:$0xff]
    %v100 = vld [vmem:[%s1 + $0x200] sm:$0xff]
    %v101 = vld [vmem:[%s1 + $0x208] sm:$0xff]
    %v102 = vld [vmem:[%s1 + $0x210] sm:$0xff]
    %v103 = vld [vmem:[%s1 + $0x218] sm:$0xff]
    %v104 = vld [vmem:[%s1 + $0x220] sm:$0xff]
    %v105 = vld [vmem:[%s1 + $0x228] sm:$0xff]
    %v106 = vld [vmem:[%s1 + $0x230] sm:$0xff]
    %v107 = vld [vmem:[%s1 + $0x238] sm:$0xff]
    %v108 = vld [vmem:[%s1 + $0x240] sm:$0xff]
    %v109 = vld [vmem:[%s1 + $0x248] sm:$0xff]
    %v110 = vld [vmem:[%s1 + $0x250] sm:$0xff]
    %v111 = vld [vmem:[%s1 + $0x258] sm:$0xff]
    %v112 = vld [vmem:[%s1 + $0x260] sm:$0xff]
    %v113 = vld [vmem:[%s1 + $0x268] sm:$0xff]
    %v114 = vld [vmem:[%s1 + $0x270] sm:$0xff]
    %v115 = vld [vmem:[%s1 + $0x278] sm:$0xff]
    %v116 = vld [vmem:[%s1 + $0x280] sm:$0xff]
    %v117 = vld [vmem:[%s1 + $0x288] sm:$0xff]
    %v118 = vld [vmem:[%s1 + $0x290] sm:$0xff]
    %v119 = vld [vmem:[%s1 + $0x298] sm:$0xff]
    %v120 = vld [vmem:[%s1 + $0x2a0] sm:$0xff]
    %v121 = vld [vmem:[%s1 + $0x2a8] sm:$0xff]
    %v122 = vld [vmem:[%s1 + $0x2b0] sm:$0xff]
    %v123 = vld [vmem:[%s1 + $0x2b8] sm:$0xff]
    %v124 = vld [vmem:[%s1 + $0x2c0] sm:$0xff]
    %v125 = vld [vmem:[%s1 + $0x2c8] sm:$0xff]
    %v126 = vld [vmem:[%s1 + $0x2d0] sm:$0xff]
    %v127 = vld [vmem:[%s1 + $0x2d8] sm:$0xff]
    %v128 = vld [vmem:[%s1 + $0x2e0] sm:$0xff]
    %v129 = vld [vmem:[%s1 + $0x2e8] sm:$0xff]
    %v130 = vld [vmem:[%s1 + $0x2f0] sm:$0xff]
    %v131 = vld [vmem:[%s1 + $0x2f8] sm:$0xff]
    %v132 = vld [vmem:[%s1 + $0x300] sm:$0xff]
    %v133 = vld [vmem:[%s1 + $0x308] sm:$0xff]
    %v134 = vld [vmem:[%s1 + $0x310] sm:$0xff]
    %v135 = vld [vmem:[%s1 + $0x318] sm:$0xff]
    %v136 = vld [vmem:[%s1 + $0x320] sm:$0xff]
    %v137 = vld [vmem:[%s1 + $0x328] sm:$0xff]
    %v138 = vld [vmem:[%s1 + $0x330] sm:$0xff]
    %v139 = vld [vmem:[%s1 + $0x338] sm:$0xff]
    %v140 = vld [vmem:[%s1 + $0x340] sm:$0xff]
    %v141 = vld [vmem:[%s1 + $0x348] sm:$0xff]
    %v142 = vld [vmem:[%s1 + $0x350] sm:$0xff]
    %v143 = vld [vmem:[%s1 + $0x358] sm:$0xff]
    %v144 = vld [vmem:[%s1 + $0x360] sm:$0xff]
    %v145 = vld [vmem:[%s1 + $0x368] sm:$0xff]
    %v146 = vld [vmem:[%s1 + $0x370] sm:$0xff]
    %v147 = vld [vmem:[%s1 + $0x378] sm:$0xff]
    %v148 = vld [vmem:[%s2] sm:$0x3]
    %v150 = vlaneseq
    %v151 = vshrl.u32 %v150, 7
    %v152 = vsub.s32 0, %v151
    %v153 = vrot.slane %v148, %v152
    %v154 = vlaneseq
    %v155 = vshrl.u32 %v154, 7
    %v156 = vsub.s32 1, %v155
    %v157 = vrot.slane %v148, %v156
    %v168 = vunpack.c.l.b16 %v28
    %v169 = vunpack.c.h.b16 %v28
    %v170 = vunpack.c.l.b16 %v29
    %v171 = vunpack.c.h.b16 %v29
    %v172 = vunpack.c.l.b16 %v30
    %v173 = vunpack.c.h.b16 %v30
    %v174 = vunpack.c.l.b16 %v31
    %v175 = vunpack.c.l.b16 %v32
    %v176 = vunpack.c.h.b16 %v32
    %v177 = vunpack.c.l.b16 %v33
    %v178 = vunpack.c.h.b16 %v33
    %v179 = vunpack.c.l.b16 %v34
    %v180 = vunpack.c.h.b16 %v34
    %v181 = vunpack.c.l.b16 %v35
    %v182 = vpack.c.b16 %v175, %v168
    %v183 = vpack.c.b16 %v176, %v169
    %v184 = vpack.c.b16 %v177, %v170
    %v185 = vpack.c.b16 %v178, %v171
    %v186 = vpack.c.b16 %v179, %v172
    %v187 = vpack.c.b16 %v180, %v173
    %v188 = vpack.c.b16 %v181, %v174
    %v308 = vunpack.c.l.b16 %v36
    %v309 = vunpack.c.h.b16 %v36
    %v310 = vunpack.c.l.b16 %v37
    %v311 = vunpack.c.h.b16 %v37
    %v312 = vunpack.c.l.b16 %v38
    %v313 = vunpack.c.h.b16 %v38
    %v314 = vunpack.c.l.b16 %v39
    %v315 = vunpack.c.h.b16 %v39
    %v316 = vunpack.c.l.b16 %v40
    %v317 = vunpack.c.h.b16 %v40
    %v318 = vunpack.c.l.b16 %v41
    %v319 = vunpack.c.h.b16 %v41
    %v320 = vunpack.c.l.b16 %v42
    %v321 = vunpack.c.h.b16 %v42
    %v322 = vunpack.c.l.b16 %v43
    %v323 = vunpack.c.h.b16 %v43
    %v324 = vunpack.c.l.b16 %v44
    %v325 = vunpack.c.h.b16 %v44
    %v326 = vunpack.c.l.b16 %v45
    %v327 = vunpack.c.h.b16 %v45
    %v328 = vunpack.c.l.b16 %v46
    %v329 = vunpack.c.h.b16 %v46
    %v330 = vunpack.c.l.b16 %v47
    %v331 = vunpack.c.h.b16 %v47
    %v332 = vunpack.c.l.b16 %v48
    %v333 = vunpack.c.h.b16 %v48
    %v334 = vunpack.c.l.b16 %v49
    %v335 = vunpack.c.h.b16 %v49
    %v336 = vunpack.c.l.b16 %v50
    %v337 = vunpack.c.h.b16 %v50
    %v338 = vunpack.c.l.b16 %v51
    %v339 = vunpack.c.h.b16 %v51
    %v340 = vunpack.c.l.b16 %v52
    %v341 = vunpack.c.h.b16 %v52
    %v342 = vunpack.c.l.b16 %v53
    %v343 = vunpack.c.h.b16 %v53
    %v344 = vunpack.c.l.b16 %v54
    %v345 = vunpack.c.h.b16 %v54
    %v346 = vunpack.c.l.b16 %v55
    %v347 = vunpack.c.h.b16 %v55
    %v348 = vunpack.c.l.b16 %v56
    %v349 = vunpack.c.h.b16 %v56
    %v350 = vunpack.c.l.b16 %v57
    %v351 = vunpack.c.h.b16 %v57
    %v352 = vunpack.c.l.b16 %v58
    %v353 = vunpack.c.h.b16 %v58
    %v354 = vunpack.c.l.b16 %v59
    %v355 = vunpack.c.h.b16 %v59
    %v356 = vunpack.c.l.b16 %v60
    %v357 = vunpack.c.h.b16 %v60
    %v358 = vunpack.c.l.b16 %v61
    %v359 = vunpack.c.h.b16 %v61
    %v360 = vunpack.c.l.b16 %v62
    %v361 = vunpack.c.h.b16 %v62
    %v362 = vunpack.c.l.b16 %v63
    %v363 = vunpack.c.h.b16 %v63
    %v364 = vunpack.c.l.b16 %v64
    %v365 = vunpack.c.h.b16 %v64
    %v366 = vunpack.c.l.b16 %v65
    %v367 = vunpack.c.h.b16 %v65
    %v368 = vunpack.c.l.b16 %v66
    %v369 = vunpack.c.h.b16 %v66
    %v370 = vunpack.c.l.b16 %v67
    %v371 = vunpack.c.h.b16 %v67
    %v372 = vunpack.c.l.b16 %v68
    %v373 = vunpack.c.h.b16 %v68
    %v374 = vunpack.c.l.b16 %v69
    %v375 = vunpack.c.h.b16 %v69
    %v376 = vunpack.c.l.b16 %v70
    %v377 = vunpack.c.h.b16 %v70
    %v378 = vunpack.c.l.b16 %v71
    %v379 = vunpack.c.h.b16 %v71
    %v380 = vunpack.c.l.b16 %v72
    %v381 = vunpack.c.h.b16 %v72
    %v382 = vunpack.c.l.b16 %v73
    %v383 = vunpack.c.h.b16 %v73
    %v384 = vunpack.c.l.b16 %v74
    %v385 = vunpack.c.h.b16 %v74
    %v386 = vunpack.c.l.b16 %v75
    %v387 = vunpack.c.h.b16 %v75
    %v388 = vunpack.c.l.b16 %v76
    %v389 = vunpack.c.h.b16 %v76
    %v390 = vunpack.c.l.b16 %v77
    %v391 = vunpack.c.h.b16 %v77
    %v392 = vunpack.c.l.b16 %v78
    %v393 = vunpack.c.h.b16 %v78
    %v394 = vunpack.c.l.b16 %v79
    %v395 = vunpack.c.h.b16 %v79
    %v396 = vunpack.c.l.b16 %v80
    %v397 = vunpack.c.h.b16 %v80
    %v398 = vunpack.c.l.b16 %v81
    %v399 = vunpack.c.h.b16 %v81
    %v400 = vunpack.c.l.b16 %v82
    %v401 = vunpack.c.h.b16 %v82
    %v402 = vunpack.c.l.b16 %v83
    %v403 = vunpack.c.h.b16 %v83
    %v404 = vunpack.c.l.b16 %v84
    %v405 = vunpack.c.h.b16 %v84
    %v406 = vunpack.c.l.b16 %v85
    %v407 = vunpack.c.h.b16 %v85
    %v408 = vunpack.c.l.b16 %v86
    %v409 = vunpack.c.h.b16 %v86
    %v410 = vunpack.c.l.b16 %v87
    %v411 = vunpack.c.h.b16 %v87
    %v412 = vunpack.c.l.b16 %v88
    %v413 = vunpack.c.h.b16 %v88
    %v414 = vunpack.c.l.b16 %v89
    %v415 = vunpack.c.h.b16 %v89
    %v416 = vunpack.c.l.b16 %v90
    %v417 = vunpack.c.h.b16 %v90
    %v418 = vunpack.c.l.b16 %v91
    %v419 = vunpack.c.h.b16 %v91
    %v420 = vunpack.c.l.b16 %v92
    %v421 = vunpack.c.h.b16 %v92
    %v422 = vunpack.c.l.b16 %v93
    %v423 = vunpack.c.h.b16 %v93
    %v424 = vunpack.c.l.b16 %v94
    %v425 = vunpack.c.h.b16 %v94
    %v426 = vunpack.c.l.b16 %v95
    %v427 = vunpack.c.h.b16 %v95
    %v428 = vunpack.c.l.b16 %v96
    %v429 = vunpack.c.h.b16 %v96
    %v430 = vunpack.c.l.b16 %v97
    %v431 = vunpack.c.h.b16 %v97
    %v432 = vunpack.c.l.b16 %v98
    %v433 = vunpack.c.h.b16 %v98
    %v434 = vunpack.c.l.b16 %v99
    %v435 = vunpack.c.h.b16 %v99
    %v436 = vunpack.c.l.b16 %v100
    %v437 = vunpack.c.h.b16 %v100
    %v438 = vunpack.c.l.b16 %v101
    %v439 = vunpack.c.h.b16 %v101
    %v440 = vunpack.c.l.b16 %v102
    %v441 = vunpack.c.h.b16 %v102
    %v442 = vunpack.c.l.b16 %v103
    %v443 = vunpack.c.h.b16 %v103
    %v444 = vunpack.c.l.b16 %v104
    %v445 = vunpack.c.h.b16 %v104
    %v446 = vunpack.c.l.b16 %v105
    %v447 = vunpack.c.h.b16 %v105
    %v448 = vunpack.c.l.b16 %v106
    %v449 = vunpack.c.h.b16 %v106
    %v450 = vunpack.c.l.b16 %v107
    %v451 = vunpack.c.h.b16 %v107
    %v452 = vunpack.c.l.b16 %v108
    %v453 = vunpack.c.h.b16 %v108
    %v454 = vunpack.c.l.b16 %v109
    %v455 = vunpack.c.h.b16 %v109
    %v456 = vunpack.c.l.b16 %v110
    %v457 = vunpack.c.h.b16 %v110
    %v458 = vunpack.c.l.b16 %v111
    %v459 = vunpack.c.h.b16 %v111
    %v460 = vunpack.c.l.b16 %v112
    %v461 = vunpack.c.h.b16 %v112
    %v462 = vunpack.c.l.b16 %v113
    %v463 = vunpack.c.h.b16 %v113
    %v464 = vunpack.c.l.b16 %v114
    %v465 = vunpack.c.h.b16 %v114
    %v466 = vunpack.c.l.b16 %v115
    %v467 = vunpack.c.h.b16 %v115
    %v468 = vunpack.c.l.b16 %v116
    %v469 = vunpack.c.h.b16 %v116
    %v470 = vunpack.c.l.b16 %v117
    %v471 = vunpack.c.h.b16 %v117
    %v472 = vunpack.c.l.b16 %v118
    %v473 = vunpack.c.h.b16 %v118
    %v474 = vunpack.c.l.b16 %v119
    %v475 = vunpack.c.h.b16 %v119
    %v476 = vunpack.c.l.b16 %v120
    %v477 = vunpack.c.h.b16 %v120
    %v478 = vunpack.c.l.b16 %v121
    %v479 = vunpack.c.h.b16 %v121
    %v480 = vunpack.c.l.b16 %v122
    %v481 = vunpack.c.h.b16 %v122
    %v482 = vunpack.c.l.b16 %v123
    %v483 = vunpack.c.h.b16 %v123
    %v484 = vunpack.c.l.b16 %v124
    %v485 = vunpack.c.h.b16 %v124
    %v486 = vunpack.c.l.b16 %v125
    %v487 = vunpack.c.h.b16 %v125
    %v488 = vunpack.c.l.b16 %v126
    %v489 = vunpack.c.h.b16 %v126
    %v490 = vunpack.c.l.b16 %v127
    %v491 = vunpack.c.h.b16 %v127
    %v492 = vunpack.c.l.b16 %v128
    %v493 = vunpack.c.h.b16 %v128
    %v494 = vunpack.c.l.b16 %v129
    %v495 = vunpack.c.h.b16 %v129
    %v496 = vunpack.c.l.b16 %v130
    %v497 = vunpack.c.h.b16 %v130
    %v498 = vunpack.c.l.b16 %v131
    %v499 = vunpack.c.h.b16 %v131
    %v500 = vunpack.c.l.b16 %v132
    %v501 = vunpack.c.h.b16 %v132
    %v502 = vunpack.c.l.b16 %v133
    %v503 = vunpack.c.h.b16 %v133
    %v504 = vunpack.c.l.b16 %v134
    %v505 = vunpack.c.h.b16 %v134
    %v506 = vunpack.c.l.b16 %v135
    %v507 = vunpack.c.h.b16 %v135
    %v508 = vunpack.c.l.b16 %v136
    %v509 = vunpack.c.h.b16 %v136
    %v510 = vunpack.c.l.b16 %v137
    %v511 = vunpack.c.h.b16 %v137
    %v512 = vunpack.c.l.b16 %v138
    %v513 = vunpack.c.h.b16 %v138
    %v514 = vunpack.c.l.b16 %v139
    %v515 = vunpack.c.h.b16 %v139
    %v516 = vunpack.c.l.b16 %v140
    %v517 = vunpack.c.h.b16 %v140
    %v518 = vunpack.c.l.b16 %v141
    %v519 = vunpack.c.h.b16 %v141
    %v520 = vunpack.c.l.b16 %v142
    %v521 = vunpack.c.h.b16 %v142
    %v522 = vunpack.c.l.b16 %v143
    %v523 = vunpack.c.h.b16 %v143
    %v524 = vunpack.c.l.b16 %v144
    %v525 = vunpack.c.h.b16 %v144
    %v526 = vunpack.c.l.b16 %v145
    %v527 = vunpack.c.h.b16 %v145
    %v528 = vunpack.c.l.b16 %v146
    %v529 = vunpack.c.h.b16 %v146
    %v530 = vunpack.c.l.b16 %v147
    %v531 = vunpack.c.h.b16 %v147
    %v532 = vpack.c.b16 %v310, %v308
    %v533 = vpack.c.b16 %v311, %v309
    %v534 = vpack.c.b16 %v314, %v312
    %v535 = vpack.c.b16 %v315, %v313
    %v536 = vpack.c.b16 %v318, %v316
    %v537 = vpack.c.b16 %v319, %v317
    %v538 = vpack.c.b16 %v322, %v320
    %v539 = vpack.c.b16 %v323, %v321
    %v540 = vpack.c.b16 %v326, %v324
    %v541 = vpack.c.b16 %v327, %v325
    %v542 = vpack.c.b16 %v330, %v328
    %v543 = vpack.c.b16 %v331, %v329
    %v544 = vpack.c.b16 %v334, %v332
    %v545 = vpack.c.b16 %v335, %v333
    %v546 = vpack.c.b16 %v338, %v336
    %v547 = vpack.c.b16 %v339, %v337
    %v548 = vpack.c.b16 %v342, %v340
    %v549 = vpack.c.b16 %v343, %v341
    %v550 = vpack.c.b16 %v346, %v344
    %v551 = vpack.c.b16 %v347, %v345
    %v552 = vpack.c.b16 %v350, %v348
    %v553 = vpack.c.b16 %v351, %v349
    %v554 = vpack.c.b16 %v354, %v352
    %v555 = vpack.c.b16 %v355, %v353
    %v556 = vpack.c.b16 %v358, %v356
    %v557 = vpack.c.b16 %v359, %v357
    %v558 = vpack.c.b16 %v362, %v360
    %v559 = vpack.c.b16 %v363, %v361
    %v560 = vpack.c.b16 %v366, %v364
    %v561 = vpack.c.b16 %v367, %v365
    %v562 = vpack.c.b16 %v370, %v368
    %v563 = vpack.c.b16 %v371, %v369
    %v564 = vpack.c.b16 %v374, %v372
    %v565 = vpack.c.b16 %v375, %v373
    %v566 = vpack.c.b16 %v378, %v376
    %v567 = vpack.c.b16 %v379, %v377
    %v568 = vpack.c.b16 %v382, %v380
    %v569 = vpack.c.b16 %v383, %v381
    %v570 = vpack.c.b16 %v386, %v384
    %v571 = vpack.c.b16 %v387, %v385
    %v572 = vpack.c.b16 %v390, %v388
    %v573 = vpack.c.b16 %v391, %v389
    %v574 = vpack.c.b16 %v394, %v392
    %v575 = vpack.c.b16 %v395, %v393
    %v576 = vpack.c.b16 %v398, %v396
    %v577 = vpack.c.b16 %v399, %v397
    %v578 = vpack.c.b16 %v402, %v400
    %v579 = vpack.c.b16 %v403, %v401
    %v580 = vpack.c.b16 %v406, %v404
    %v581 = vpack.c.b16 %v407, %v405
    %v582 = vpack.c.b16 %v410, %v408
    %v583 = vpack.c.b16 %v411, %v409
    %v584 = vpack.c.b16 %v414, %v412
    %v585 = vpack.c.b16 %v415, %v413
    %v586 = vpack.c.b16 %v418, %v416
    %v587 = vpack.c.b16 %v419, %v417
    %v588 = vpack.c.b16 %v422, %v420
    %v589 = vpack.c.b16 %v423, %v421
    %v590 = vpack.c.b16 %v426, %v424
    %v591 = vpack.c.b16 %v427, %v425
    %v592 = vpack.c.b16 %v430, %v428
    %v593 = vpack.c.b16 %v431, %v429
    %v594 = vpack.c.b16 %v434, %v432
    %v595 = vpack.c.b16 %v435, %v433
    %v596 = vpack.c.b16 %v438, %v436
    %v597 = vpack.c.b16 %v439, %v437
    %v598 = vpack.c.b16 %v442, %v440
    %v599 = vpack.c.b16 %v443, %v441
    %v600 = vpack.c.b16 %v446, %v444
    %v601 = vpack.c.b16 %v447, %v445
    %v602 = vpack.c.b16 %v450, %v448
    %v603 = vpack.c.b16 %v451, %v449
    %v604 = vpack.c.b16 %v454, %v452
    %v605 = vpack.c.b16 %v455, %v453
    %v606 = vpack.c.b16 %v458, %v456
    %v607 = vpack.c.b16 %v459, %v457
    %v608 = vpack.c.b16 %v462, %v460
    %v609 = vpack.c.b16 %v463, %v461
    %v610 = vpack.c.b16 %v466, %v464
    %v611 = vpack.c.b16 %v467, %v465
    %v612 = vpack.c.b16 %v470, %v468
    %v613 = vpack.c.b16 %v471, %v469
    %v614 = vpack.c.b16 %v474, %v472
    %v615 = vpack.c.b16 %v475, %v473
    %v616 = vpack.c.b16 %v478, %v476
    %v617 = vpack.c.b16 %v479, %v477
    %v618 = vpack.c.b16 %v482, %v480
    %v619 = vpack.c.b16 %v483, %v481
    %v620 = vpack.c.b16 %v486, %v484
    %v621 = vpack.c.b16 %v487, %v485
    %v622 = vpack.c.b16 %v490, %v488
    %v623 = vpack.c.b16 %v491, %v489
    %v624 = vpack.c.b16 %v494, %v492
    %v625 = vpack.c.b16 %v495, %v493
    %v626 = vpack.c.b16 %v498, %v496
    %v627 = vpack.c.b16 %v499, %v497
    %v628 = vpack.c.b16 %v502, %v500
    %v629 = vpack.c.b16 %v503, %v501
    %v630 = vpack.c.b16 %v506, %v504
    %v631 = vpack.c.b16 %v507, %v505
    %v632 = vpack.c.b16 %v510, %v508
    %v633 = vpack.c.b16 %v511, %v509
    %v634 = vpack.c.b16 %v514, %v512
    %v635 = vpack.c.b16 %v515, %v513
    %v636 = vpack.c.b16 %v518, %v516
    %v637 = vpack.c.b16 %v519, %v517
    %v638 = vpack.c.b16 %v522, %v520
    %v639 = vpack.c.b16 %v523, %v521
    %v640 = vpack.c.b16 %v526, %v524
    %v641 = vpack.c.b16 %v527, %v525
    %v642 = vpack.c.b16 %v530, %v528
    %v643 = vpack.c.b16 %v531, %v529
    %756 = vmatprep.subr.bf16.mxu0 %v547
    %757 = vmatpush1.bf16.msra.mxu0 %v546
    %758 = vmatprep.subr.bf16.mxu0 %v545
    %759 = vmatpush1.bf16.msra.mxu0 %v544
    %760 = vmatprep.subr.bf16.mxu0 %v543
    %761 = vmatpush1.bf16.msra.mxu0 %v542
    %762 = vmatprep.subr.bf16.mxu0 %v541
    %763 = vmatpush1.bf16.msra.mxu0 %v540
    %764 = vmatprep.subr.bf16.mxu0 %v539
    %765 = vmatpush1.bf16.msra.mxu0 %v538
    %766 = vmatprep.subr.bf16.mxu0 %v537
    %767 = vmatpush1.bf16.msra.mxu0 %v536
    %768 = vmatprep.subr.bf16.mxu0 %v535
    %769 = vmatpush1.bf16.msra.mxu0 %v534
    %770 = vmatprep.subr.bf16.mxu0 %v533
    %771 = vmatpush1.bf16.msra.mxu0 %v532
    %772 = vmatprep.subr.bf16.mxu0 %v563
    %773 = vmatpush2.bf16.msra.mxu0 %v562
    %774 = vmatprep.subr.bf16.mxu0 %v561
    %775 = vmatpush2.bf16.msra.mxu0 %v560
    %776 = vmatprep.subr.bf16.mxu0 %v559
    %777 = vmatpush2.bf16.msra.mxu0 %v558
    %778 = vmatprep.subr.bf16.mxu0 %v557
    %779 = vmatpush2.bf16.msra.mxu0 %v556
    %780 = vmatprep.subr.bf16.mxu0 %v555
    %781 = vmatpush2.bf16.msra.mxu0 %v554
    %782 = vmatprep.subr.bf16.mxu0 %v553
    %783 = vmatpush2.bf16.msra.mxu0 %v552
    %784 = vmatprep.subr.bf16.mxu0 %v551
    %785 = vmatpush2.bf16.msra.mxu0 %v550
    %786 = vmatprep.subr.bf16.mxu0 %v549
    %787 = vmatpush2.bf16.msra.mxu0 %v548
    %788 = vmatprep.mubr.bf16.mxu0 %v183
    %789 = vmatmul.mubr.bf16.gmra.mxu0 %v182
    %v790 = vpop.f32.mrf.mxu0
    %v791 = vadd.f32 %v153, %v790
    %v792 = vpop.f32.mrf.mxu0
    %v793 = vadd.f32 %v157, %v792
    %v794 = vpop.f32.mrf.mxu0
    %v795 = vadd.f32 %v153, %v794
    %v796 = vpop.f32.mrf.mxu0
    %v797 = vadd.f32 %v157, %v796
    %798 = vdwg.mxu0
    %799 = vmatprep.subr.bf16.mxu0 %v579
    %800 = vmatpush1.bf16.msra.mxu0 %v578
    %801 = vmatprep.subr.bf16.mxu0 %v577
    %802 = vmatpush1.bf16.msra.mxu0 %v576
    %803 = vmatprep.subr.bf16.mxu0 %v575
    %804 = vmatpush1.bf16.msra.mxu0 %v574
    %805 = vmatprep.subr.bf16.mxu0 %v573
    %806 = vmatpush1.bf16.msra.mxu0 %v572
    %807 = vmatprep.subr.bf16.mxu0 %v571
    %808 = vmatpush1.bf16.msra.mxu0 %v570
    %809 = vmatprep.subr.bf16.mxu0 %v569
    %810 = vmatpush1.bf16.msra.mxu0 %v568
    %811 = vmatprep.subr.bf16.mxu0 %v567
    %812 = vmatpush1.bf16.msra.mxu0 %v566
    %813 = vmatprep.subr.bf16.mxu0 %v565
    %814 = vmatpush1.bf16.msra.mxu0 %v564
    %815 = vmatprep.subr.bf16.mxu0 %v595
    %816 = vmatpush2.bf16.msra.mxu0 %v594
    %817 = vmatprep.subr.bf16.mxu0 %v593
    %818 = vmatpush2.bf16.msra.mxu0 %v592
    %819 = vmatprep.subr.bf16.mxu0 %v591
    %820 = vmatpush2.bf16.msra.mxu0 %v590
    %821 = vmatprep.subr.bf16.mxu0 %v589
    %822 = vmatpush2.bf16.msra.mxu0 %v588
    %823 = vmatprep.subr.bf16.mxu0 %v587
    %824 = vmatpush2.bf16.msra.mxu0 %v586
    %825 = vmatprep.subr.bf16.mxu0 %v585
    %826 = vmatpush2.bf16.msra.mxu0 %v584
    %827 = vmatprep.subr.bf16.mxu0 %v583
    %828 = vmatpush2.bf16.msra.mxu0 %v582
    %829 = vmatprep.subr.bf16.mxu0 %v581
    %830 = vmatpush2.bf16.msra.mxu0 %v580
    %831 = vmatprep.mubr.bf16.mxu0 %v185
    %832 = vmatmul.mubr.bf16.gmra.mxu0 %v184
    %v833 = vpop.f32.mrf.mxu0
    %v834 = vadd.f32 %v791, %v833
    %v835 = vpop.f32.mrf.mxu0
    %v836 = vadd.f32 %v793, %v835
    %v837 = vpop.f32.mrf.mxu0
    %v838 = vadd.f32 %v795, %v837
    %v839 = vpop.f32.mrf.mxu0
    %v840 = vadd.f32 %v797, %v839
    %841 = vdwg.mxu0
    %842 = vmatprep.subr.bf16.mxu0 %v611
    %843 = vmatpush1.bf16.msra.mxu0 %v610
    %844 = vmatprep.subr.bf16.mxu0 %v609
    %845 = vmatpush1.bf16.msra.mxu0 %v608
    %846 = vmatprep.subr.bf16.mxu0 %v607
    %847 = vmatpush1.bf16.msra.mxu0 %v606
    %848 = vmatprep.subr.bf16.mxu0 %v605
    %849 = vmatpush1.bf16.msra.mxu0 %v604
    %850 = vmatprep.subr.bf16.mxu0 %v603
    %851 = vmatpush1.bf16.msra.mxu0 %v602
    %852 = vmatprep.subr.bf16.mxu0 %v601
    %853 = vmatpush1.bf16.msra.mxu0 %v600
    %854 = vmatprep.subr.bf16.mxu0 %v599
    %855 = vmatpush1.bf16.msra.mxu0 %v598
    %856 = vmatprep.subr.bf16.mxu0 %v597
    %857 = vmatpush1.bf16.msra.mxu0 %v596
    %858 = vmatprep.subr.bf16.mxu0 %v627
    %859 = vmatpush2.bf16.msra.mxu0 %v626
    %860 = vmatprep.subr.bf16.mxu0 %v625
    %861 = vmatpush2.bf16.msra.mxu0 %v624
    %862 = vmatprep.subr.bf16.mxu0 %v623
    %863 = vmatpush2.bf16.msra.mxu0 %v622
    %864 = vmatprep.subr.bf16.mxu0 %v621
    %865 = vmatpush2.bf16.msra.mxu0 %v620
    %866 = vmatprep.subr.bf16.mxu0 %v619
    %867 = vmatpush2.bf16.msra.mxu0 %v618
    %868 = vmatprep.subr.bf16.mxu0 %v617
    %869 = vmatpush2.bf16.msra.mxu0 %v616
    %870 = vmatprep.subr.bf16.mxu0 %v615
    %871 = vmatpush2.bf16.msra.mxu0 %v614
    %872 = vmatprep.subr.bf16.mxu0 %v613
    %873 = vmatpush2.bf16.msra.mxu0 %v612
    %874 = vmatprep.mubr.bf16.mxu0 %v187
    %875 = vmatmul.mubr.bf16.gmra.mxu0 %v186
    %v876 = vpop.f32.mrf.mxu0
    %v877 = vadd.f32 %v834, %v876
    %v878 = vpop.f32.mrf.mxu0
    %v879 = vadd.f32 %v836, %v878
    %v880 = vpop.f32.mrf.mxu0
    %v881 = vadd.f32 %v838, %v880
    %v882 = vpop.f32.mrf.mxu0
    %v883 = vadd.f32 %v840, %v882
    %884 = vdwg.mxu0
    %885 = vmatprep.subr.bf16.mxu0 %v643
    %886 = vmatpush1.bf16.msra.mxu0 %v642
    %887 = vmatprep.subr.bf16.mxu0 %v641
    %888 = vmatpush1.bf16.msra.mxu0 %v640
    %889 = vmatprep.subr.bf16.mxu0 %v639
    %890 = vmatpush1.bf16.msra.mxu0 %v638
    %891 = vmatprep.subr.bf16.mxu0 %v637
    %892 = vmatpush1.bf16.msra.mxu0 %v636
    %893 = vmatprep.subr.bf16.mxu0 %v635
    %894 = vmatpush1.bf16.msra.mxu0 %v634
    %895 = vmatprep.subr.bf16.mxu0 %v633
    %896 = vmatpush1.bf16.msra.mxu0 %v632
    %897 = vmatprep.subr.bf16.mxu0 %v631
    %898 = vmatpush1.bf16.msra.mxu0 %v630
    %899 = vmatprep.subr.bf16.mxu0 %v629
    %900 = vmatpush1.bf16.msra.mxu0 %v628
    %901 = vmatprep.subr.bf16.mxu0 0
    %902 = vmatpush2.bf16.msra.mxu0 0
    %903 = vmatprep.subr.bf16.mxu0 0
    %904 = vmatpush2.bf16.msra.mxu0 0
    %905 = vmatprep.subr.bf16.mxu0 0
    %906 = vmatpush2.bf16.msra.mxu0 0
    %907 = vmatprep.subr.bf16.mxu0 0
    %908 = vmatpush2.bf16.msra.mxu0 0
    %909 = vmatprep.subr.bf16.mxu0 0
    %910 = vmatpush2.bf16.msra.mxu0 0
    %911 = vmatprep.subr.bf16.mxu0 0
    %912 = vmatpush2.bf16.msra.mxu0 0
    %913 = vmatprep.subr.bf16.mxu0 0
    %914 = vmatpush2.bf16.msra.mxu0 0
    %915 = vmatprep.subr.bf16.mxu0 0
    %916 = vmatpush2.bf16.msra.mxu0 0
    %917 = vmatprep.mubr.bf16.mxu0 0
    %918 = vmatmul.mubr.bf16.gmra.mxu0 %v188
    %v919 = vpop.f32.mrf.mxu0
    %v920 = vadd.f32 %v877, %v919
    %v921 = vpop.f32.mrf.mxu0
    %v922 = vadd.f32 %v879, %v921
    %v923 = vpop.f32.mrf.mxu0
    %v924 = vadd.f32 %v881, %v923
    %v925 = vpop.f32.mrf.mxu0
    %v926 = vadd.f32 %v883, %v925
    %927 = vdwg.mxu0
    %v928 = vmax.f32 %v920, 0.0
    %v929 = vmax.f32 %v922, 0.0
    %v930 = vmax.f32 %v924, 0.0
    %v931 = vmax.f32 %v926, 0.0
    %v932 = vpack.c.bf16 %v930, %v928
    %v933 = vpack.c.bf16 %v931, %v929
    %v934 = vld [vmem:[%s3] sm:$0xf]
    %v935 = vld [vmem:[%s3 + $0x4] sm:$0xf]
    %v936 = vld [vmem:[%s3 + $0x8] sm:$0xf]
    %v937 = vld [vmem:[%s3 + $0xc] sm:$0xf]
    %v938 = vld [vmem:[%s3 + $0x10] sm:$0xf]
    %v939 = vld [vmem:[%s3 + $0x14] sm:$0xf]
    %v940 = vld [vmem:[%s3 + $0x18] sm:$0xf]
    %v941 = vld [vmem:[%s3 + $0x1c] sm:$0xf]
    %v942 = vld [vmem:[%s3 + $0x20] sm:$0xf]
    %v943 = vld [vmem:[%s3 + $0x24] sm:$0xf]
    %v944 = vld [vmem:[%s3 + $0x28] sm:$0xf]
    %v945 = vld [vmem:[%s3 + $0x2c] sm:$0xf]
    %v946 = vld [vmem:[%s3 + $0x30] sm:$0xf]
    %v947 = vld [vmem:[%s3 + $0x34] sm:$0xf]
    %v948 = vld [vmem:[%s3 + $0x38] sm:$0xf]
    %v949 = vld [vmem:[%s3 + $0x3c] sm:$0xf]
    %v950 = vld [vmem:[%s3 + $0x40] sm:$0xf]
    %v951 = vld [vmem:[%s3 + $0x44] sm:$0xf]
    %v952 = vld [vmem:[%s3 + $0x48] sm:$0xf]
    %v953 = vld [vmem:[%s3 + $0x4c] sm:$0xf]
    %v954 = vld [vmem:[%s3 + $0x50] sm:$0xf]
    %v955 = vld [vmem:[%s3 + $0x54] sm:$0xf]
    %v956 = vld [vmem:[%s3 + $0x58] sm:$0xf]
    %v957 = vld [vmem:[%s3 + $0x5c] sm:$0xf]
    %v958 = vld [vmem:[%s3 + $0x60] sm:$0xf]
    %v959 = vld [vmem:[%s3 + $0x64] sm:$0xf]
    %v960 = vld [vmem:[%s3 + $0x68] sm:$0xf]
    %v961 = vld [vmem:[%s3 + $0x6c] sm:$0xf]
    %v962 = vld [vmem:[%s3 + $0x70] sm:$0xf]
    %v963 = vld [vmem:[%s3 + $0x74] sm:$0xf]
    %v964 = vld [vmem:[%s3 + $0x78] sm:$0xf]
    %v965 = vld [vmem:[%s3 + $0x7c] sm:$0xf]
    %v966 = vld [vmem:[%s4] sm:$0x1]
    %v968 = vlaneseq
    %v969 = vshrl.u32 %v968, 7
    %v970 = vsub.s32 0, %v969
    %v971 = vrot.slane %v966, %v970
    %v1005 = vunpack.c.l.b16 %v934
    %v1006 = vunpack.c.l.b16 %v935
    %v1007 = vunpack.c.l.b16 %v936
    %v1008 = vunpack.c.l.b16 %v937
    %v1009 = vunpack.c.l.b16 %v938
    %v1010 = vunpack.c.l.b16 %v939
    %v1011 = vunpack.c.l.b16 %v940
    %v1012 = vunpack.c.l.b16 %v941
    %v1013 = vunpack.c.l.b16 %v942
    %v1014 = vunpack.c.l.b16 %v943
    %v1015 = vunpack.c.l.b16 %v944
    %v1016 = vunpack.c.l.b16 %v945
    %v1017 = vunpack.c.l.b16 %v946
    %v1018 = vunpack.c.l.b16 %v947
    %v1019 = vunpack.c.l.b16 %v948
    %v1020 = vunpack.c.l.b16 %v949
    %v1021 = vunpack.c.l.b16 %v950
    %v1022 = vunpack.c.l.b16 %v951
    %v1023 = vunpack.c.l.b16 %v952
    %v1024 = vunpack.c.l.b16 %v953
    %v1025 = vunpack.c.l.b16 %v954
    %v1026 = vunpack.c.l.b16 %v955
    %v1027 = vunpack.c.l.b16 %v956
    %v1028 = vunpack.c.l.b16 %v957
    %v1029 = vunpack.c.l.b16 %v958
    %v1030 = vunpack.c.l.b16 %v959
    %v1031 = vunpack.c.l.b16 %v960
    %v1032 = vunpack.c.l.b16 %v961
    %v1033 = vunpack.c.l.b16 %v962
    %v1034 = vunpack.c.l.b16 %v963
    %v1035 = vunpack.c.l.b16 %v964
    %v1036 = vunpack.c.l.b16 %v965
    %v1037 = vpack.c.b16 %v1006, %v1005
    %v1038 = vpack.c.b16 %v1008, %v1007
    %v1039 = vpack.c.b16 %v1010, %v1009
    %v1040 = vpack.c.b16 %v1012, %v1011
    %v1041 = vpack.c.b16 %v1014, %v1013
    %v1042 = vpack.c.b16 %v1016, %v1015
    %v1043 = vpack.c.b16 %v1018, %v1017
    %v1044 = vpack.c.b16 %v1020, %v1019
    %v1045 = vpack.c.b16 %v1022, %v1021
    %v1046 = vpack.c.b16 %v1024, %v1023
    %v1047 = vpack.c.b16 %v1026, %v1025
    %v1048 = vpack.c.b16 %v1028, %v1027
    %v1049 = vpack.c.b16 %v1030, %v1029
    %v1050 = vpack.c.b16 %v1032, %v1031
    %v1051 = vpack.c.b16 %v1034, %v1033
    %v1052 = vpack.c.b16 %v1036, %v1035
    %1069 = vmatprep.subr.bf16.mxu0 0
    %1070 = vmatpush1.bf16.msra.mxu0 %v1044
    %1071 = vmatprep.subr.bf16.mxu0 0
    %1072 = vmatpush1.bf16.msra.mxu0 %v1043
    %1073 = vmatprep.subr.bf16.mxu0 0
    %1074 = vmatpush1.bf16.msra.mxu0 %v1042
    %1075 = vmatprep.subr.bf16.mxu0 0
    %1076 = vmatpush1.bf16.msra.mxu0 %v1041
    %1077 = vmatprep.subr.bf16.mxu0 0
    %1078 = vmatpush1.bf16.msra.mxu0 %v1040
    %1079 = vmatprep.subr.bf16.mxu0 0
    %1080 = vmatpush1.bf16.msra.mxu0 %v1039
    %1081 = vmatprep.subr.bf16.mxu0 0
    %1082 = vmatpush1.bf16.msra.mxu0 %v1038
    %1083 = vmatprep.subr.bf16.mxu0 0
    %1084 = vmatpush1.bf16.msra.mxu0 %v1037
    %1085 = vmatprep.subr.bf16.mxu0 0
    %1086 = vmatpush2.bf16.msra.mxu0 %v1052
    %1087 = vmatprep.subr.bf16.mxu0 0
    %1088 = vmatpush2.bf16.msra.mxu0 %v1051
    %1089 = vmatprep.subr.bf16.mxu0 0
    %1090 = vmatpush2.bf16.msra.mxu0 %v1050
    %1091 = vmatprep.subr.bf16.mxu0 0
    %1092 = vmatpush2.bf16.msra.mxu0 %v1049
    %1093 = vmatprep.subr.bf16.mxu0 0
    %1094 = vmatpush2.bf16.msra.mxu0 %v1048
    %1095 = vmatprep.subr.bf16.mxu0 0
    %1096 = vmatpush2.bf16.msra.mxu0 %v1047
    %1097 = vmatprep.subr.bf16.mxu0 0
    %1098 = vmatpush2.bf16.msra.mxu0 %v1046
    %1099 = vmatprep.subr.bf16.mxu0 0
    %1100 = vmatpush2.bf16.msra.mxu0 %v1045
    %1101 = vmatprep.mubr.bf16.mxu0 %v933
    %1102 = vmatmul.mubr.bf16.gmra.mxu0 %v932
    %v1103 = vpop.f32.mrf.mxu0
    %v1104 = vadd.f32 %v971, %v1103
    %v1105 = vpop.f32.mrf.mxu0
    %v1106 = vpop.f32.mrf.mxu0
    %v1107 = vadd.f32 %v971, %v1106
    %v1108 = vpop.f32.mrf.mxu0
    %1109 = vdwg.mxu0
    %v1110 = vmax.f32 %v1104, 0.0
    %v1111 = vmax.f32 %v1107, 0.0
    %v1112 = vpack.c.bf16 %v1111, %v1110
    %v1113 = vld [vmem:[%s5] sm:$0xf]
    %v1114 = vld [vmem:[%s5 + $0x4] sm:$0xf]
    %v1115 = vld [vmem:[%s5 + $0x8] sm:$0xf]
    %v1116 = vld [vmem:[%s5 + $0xc] sm:$0xf]
    %v1117 = vld [vmem:[%s5 + $0x10] sm:$0xf]
    %v1118 = vld [vmem:[%s5 + $0x14] sm:$0xf]
    %v1119 = vld [vmem:[%s5 + $0x18] sm:$0xf]
    %v1120 = vld [vmem:[%s5 + $0x1c] sm:$0xf]
    %v1121 = vld [vmem:[%s5 + $0x20] sm:$0xf]
    %v1122 = vld [vmem:[%s5 + $0x24] sm:$0xf]
    %v1123 = vld [vmem:[%s5 + $0x28] sm:$0xf]
    %v1124 = vld [vmem:[%s5 + $0x2c] sm:$0xf]
    %v1125 = vld [vmem:[%s5 + $0x30] sm:$0xf]
    %v1126 = vld [vmem:[%s5 + $0x34] sm:$0xf]
    %v1127 = vld [vmem:[%s5 + $0x38] sm:$0xf]
    %v1128 = vld [vmem:[%s5 + $0x3c] sm:$0xf]
    %v1129 = vld [vmem:[%s6] sm:$0x1]
    %v1131 = vlaneseq
    %v1132 = vshrl.u32 %v1131, 7
    %v1133 = vsub.s32 0, %v1132
    %v1134 = vrot.slane %v1129, %v1133
    %v1152 = vunpack.c.l.b16 %v1113
    %v1153 = vunpack.c.l.b16 %v1114
    %v1154 = vunpack.c.l.b16 %v1115
    %v1155 = vunpack.c.l.b16 %v1116
    %v1156 = vunpack.c.l.b16 %v1117
    %v1157 = vunpack.c.l.b16 %v1118
    %v1158 = vunpack.c.l.b16 %v1119
    %v1159 = vunpack.c.l.b16 %v1120
    %v1160 = vunpack.c.l.b16 %v1121
    %v1161 = vunpack.c.l.b16 %v1122
    %v1162 = vunpack.c.l.b16 %v1123
    %v1163 = vunpack.c.l.b16 %v1124
    %v1164 = vunpack.c.l.b16 %v1125
    %v1165 = vunpack.c.l.b16 %v1126
    %v1166 = vunpack.c.l.b16 %v1127
    %v1167 = vunpack.c.l.b16 %v1128
    %v1168 = vpack.c.b16 %v1153, %v1152
    %v1169 = vpack.c.b16 %v1155, %v1154
    %v1170 = vpack.c.b16 %v1157, %v1156
    %v1171 = vpack.c.b16 %v1159, %v1158
    %v1172 = vpack.c.b16 %v1161, %v1160
    %v1173 = vpack.c.b16 %v1163, %v1162
    %v1174 = vpack.c.b16 %v1165, %v1164
    %v1175 = vpack.c.b16 %v1167, %v1166
    %1184 = vmatprep.subr.bf16.mxu0 0
    %1185 = vmatpush1.bf16.msra.mxu0 %v1175
    %1186 = vmatprep.subr.bf16.mxu0 0
    %1187 = vmatpush1.bf16.msra.mxu0 %v1174
    %1188 = vmatprep.subr.bf16.mxu0 0
    %1189 = vmatpush1.bf16.msra.mxu0 %v1173
    %1190 = vmatprep.subr.bf16.mxu0 0
    %1191 = vmatpush1.bf16.msra.mxu0 %v1172
    %1192 = vmatprep.subr.bf16.mxu0 0
    %1193 = vmatpush1.bf16.msra.mxu0 %v1171
    %1194 = vmatprep.subr.bf16.mxu0 0
    %1195 = vmatpush1.bf16.msra.mxu0 %v1170
    %1196 = vmatprep.subr.bf16.mxu0 0
    %1197 = vmatpush1.bf16.msra.mxu0 %v1169
    %1198 = vmatprep.subr.bf16.mxu0 0
    %1199 = vmatpush1.bf16.msra.mxu0 %v1168
    %1200 = vmatprep.subr.bf16.mxu0 0
    %1201 = vmatpush2.bf16.msra.mxu0 0
    %1202 = vmatprep.subr.bf16.mxu0 0
    %1203 = vmatpush2.bf16.msra.mxu0 0
    %1204 = vmatprep.subr.bf16.mxu0 0
    %1205 = vmatpush2.bf16.msra.mxu0 0
    %1206 = vmatprep.subr.bf16.mxu0 0
    %1207 = vmatpush2.bf16.msra.mxu0 0
    %1208 = vmatprep.subr.bf16.mxu0 0
    %1209 = vmatpush2.bf16.msra.mxu0 0
    %1210 = vmatprep.subr.bf16.mxu0 0
    %1211 = vmatpush2.bf16.msra.mxu0 0
    %1212 = vmatprep.subr.bf16.mxu0 0
    %1213 = vmatpush2.bf16.msra.mxu0 0
    %1214 = vmatprep.subr.bf16.mxu0 0
    %1215 = vmatpush2.bf16.msra.mxu0 0
    %1216 = vmatprep.mubr.bf16.mxu0 0
    %1217 = vmatmul.mubr.bf16.gmra.mxu0 %v1112
    %v1218 = vpop.f32.mrf.mxu0
    %v1219 = vadd.f32 %v1134, %v1218
    %v1220 = vpop.f32.mrf.mxu0
    %v1221 = vpop.f32.mrf.mxu0
    %v1222 = vadd.f32 %v1134, %v1221
    %v1223 = vpop.f32.mrf.mxu0
    %1224 = vdwg.mxu0
    %1225 = vst [vmem:[#allocation2] sm:$0xff] %v1219
    %1226 = vst [vmem:[#allocation2 + $0x8] sm:$0xff] %v1222
    // Predicated region
    $region30: #{net_forward.1} parent=1 // pred_check
      _
    $region31: #{net_forward.1} parent=1 // pred_check_branch
      %1228 = sbr.rel (0) target = $region33
    $region32: #{net_forward.1} parent=1 // pred_region
      %s1230 = ssub.s32 256, 256
      %1231 = vsyncadd [#allocation3], %s1230
      %s1232 = sshll.u32 [#allocation2], 4
      %s1233 = int_to_ptr.vmem [resolvable:$true] %s1232
      %1238 = dma.vmem_to_hbm [thread:$0]  %s1233, 256, %s7, [#allocation3], 128, 128, 8
    $region33: #{net_forward.1} parent=1 // pred_fallthru
      _
    // Predicated region
    $region34: #{net_forward.1} parent=1 // pred_check
      _
    $region35: #{net_forward.1} parent=1 // pred_check_branch
      %1240 = sbr.rel (0) target = $region37
    $region36: #{net_forward.1} parent=1 // pred_region
      %1241 = dma.done [#allocation3], 256
    $region37: #{net_forward.1} parent=1 // pred_fallthru
      _
    %1242 = vsyncpa [#allocation3], 1

</llo_original>
